<compile_context>
chip_gen: v7x
topology: tpu7x:2x2x1
jax: 0.10.0
libtpu: 0.0.40
codegen_flags: <defaults>
</compile_context>

<pallas_src>
import jax
import jax.numpy as jnp
from jax.experimental import pallas as pl
from jax.experimental.pallas import tpu as pltpu


def _unet_attention_kernel(q_ref, x_ref, wq_ref, wx_ref, b_ref, wg_ref, bg_ref, y_ref):
    # q_ref: (bt, C_q, P)   x_ref/y_ref: (bt, C, P)   channels on sublanes, pixels on lanes
    # wq_ref: (C, C_q)  wx_ref: (C, C)                PyTorch conv weight [out, in] orientation
    # b_ref: (C, 1) combined bias bq + bx, wg_ref: (C, 1) gate weight, bg_ref: (1, 1) gate bias
    wq = wq_ref[...]
    wx = wx_ref[...]
    b = b_ref[...]
    wg = wg_ref[...]
    bg = bg_ref[...]

    def one_image(i):
        qi = q_ref[i]                                        # (C_q, P)
        xi = x_ref[i]                                        # (C, P)
        # v = relu(conv_query(q) + conv_x(x)): channel matmuls on the MXU, f32 acc.
        v = jnp.dot(wq, qi, preferred_element_type=jnp.float32)
        v = v + jnp.dot(wx, xi, preferred_element_type=jnp.float32)
        v = jnp.maximum(v + b, 0.0)                          # (C, P) f32
        # g = sigmoid(conv_gate(v)): tiny C->1 contraction on VPU/XLU (MXU stays free).
        g = jnp.sum(v * wg, axis=0, keepdims=True) + bg      # (1, P)
        g = jax.nn.sigmoid(g)
        # y = x * g; gate math in f32, cast only at the lane-dense store.
        y_ref[i] = (xi.astype(jnp.float32) * g).astype(y_ref.dtype)

    bt = q_ref.shape[0]
    if bt <= 8:
        # Static unroll: lets the scheduler overlap MXU/VPU work across images.
        for i in range(bt):
            one_image(i)
    else:
        def loop_body(i, carry):
            one_image(i)
            return carry
        jax.lax.fori_loop(0, bt, loop_body, 0)


_MAX_STEP_PX = 32768  # >~32K pixels per grid step buys nothing (roofline saturated)


def unet_attention(q, x, params, *, vmem_budget_bytes=None):
    """q: [B, T, C_q, H, W], x: [B, T, C, H, W]  ->  y: [B, T, C, H, W] (dtype of x)."""
    B, T, C_q, H, W = q.shape
    _, _, C, _, _ = x.shape
    wq, bq, wx, bx, wg, bg = params

    BT, HW = B * T, H * W
    io_dtype = x.dtype
    itemsize = jnp.dtype(io_dtype).itemsize

    # Free (contiguous) reshapes -- no transposes, no extra HBM traffic.
    q3 = q.reshape(BT, C_q, HW).astype(io_dtype)
    x3 = x.reshape(BT, C, HW)

    # Matmul weights in the I/O dtype (MXU inputs); bias / gate params stay f32.
    wq_m = wq.astype(io_dtype)
    wx_m = wx.astype(io_dtype)
    b = (bq.astype(jnp.float32) + bx.astype(jnp.float32)).reshape(C, 1)
    wg_col = wg.astype(jnp.float32).reshape(C, 1)
    bg_11 = bg.astype(jnp.float32).reshape(1, 1)

    # ---- Generation-aware tile sizing from a VMEM budget ---------------------
    try:
        vmem_cap = int(pltpu.get_tpu_info().vmem_capacity_bytes)
    except Exception:
        vmem_cap = 64 << 20                      # conservative: v7x per-TensorCore VMEM
    if vmem_budget_bytes is None:
        # ~70% of physical (44-48 MiB on v7x); cap on v5e/v6e since huge tiles add nothing.
        vmem_budget_bytes = min(int(vmem_cap * 0.7), 72 << 20)

    weight_bytes = 2 * ((C * C_q + C * C) * itemsize + (2 * C + 1) * 4)  # double-buffered
    per_px_bytes = 2 * (C_q + 2 * C) * itemsize                          # 2x (q + x + y) tiles
    max_px = max(128, (vmem_budget_bytes - weight_bytes) // per_px_bytes)

    if HW <= max_px:
        # Whole images per step: one contiguous DMA each; fold several if small.
        P = HW
        bt_tile = max(1, min(BT, max_px // HW, max(1, _MAX_STEP_PX // HW)))
        if bt_tile >= BT and BT > 1:
            bt_tile = pl.cdiv(BT, 2)     # keep >= 2 grid steps so both v7x TCs get work
        if BT == 1 and HW >= 256:
            P = min(HW, -(-pl.cdiv(HW, 2) // 128) * 128)   # split pixels instead
    else:
        bt_tile = 1
        P = max(128, (min(max_px, _MAX_STEP_PX) // 128) * 128)

    n_bt = pl.cdiv(BT, bt_tile)
    n_pix = pl.cdiv(HW, P)

    vmem_need = 2 * bt_tile * (C_q + 2 * C) * P * itemsize + weight_bytes
    vmem_limit = int(min(vmem_cap - (2 << 20), max(vmem_need + (8 << 20), 32 << 20)))

    def const_spec(shape):
        return pl.BlockSpec(shape, lambda i, j: (0,) * len(shape))

    n_px_total = BT * HW
    cost = pl.CostEstimate(
        flops=2 * n_px_total * (C * C_q + C * C + C),
        transcendentals=n_px_total,                         # one sigmoid per pixel
        bytes_accessed=(q3.size + 2 * x3.size) * itemsize
        + (C * C_q + C * C) * itemsize + (2 * C + 1) * 4,
    )

    y3 = pl.pallas_call(
        _unet_attention_kernel,
        out_shape=jax.ShapeDtypeStruct((BT, C, HW), io_dtype),
        grid_spec=pltpu.PrefetchScalarGridSpec(
            num_scalar_prefetch=0,
            grid=(n_bt, n_pix),
            in_specs=[
                pl.BlockSpec((bt_tile, C_q, P), lambda i, j: (i, 0, j)),  # q tile
                pl.BlockSpec((bt_tile, C, P), lambda i, j: (i, 0, j)),    # x tile
                const_spec((C, C_q)),   # wq
                const_spec((C, C)),     # wx
                const_spec((C, 1)),     # combined bias bq + bx
                const_spec((C, 1)),     # gate weight (as a column)
                const_spec((1, 1)),     # gate bias
            ],
            out_specs=pl.BlockSpec((bt_tile, C, P), lambda i, j: (i, 0, j)),
        ),
        compiler_params=pltpu.CompilerParams(
            dimension_semantics=("parallel", "parallel"),
            vmem_limit_bytes=vmem_limit,
        ),
        cost_estimate=cost,
    )(q3, x3, wq_m, wx_m, b, wg_col, bg_11)

    return y3.reshape(B, T, C, H, W)


def init_params(key, C_q, C, dtype=jnp.float32):
    """Deterministic init of the three 1x1-conv weights/biases.

    Stored in PyTorch Conv2d orientation: weight[:, :, 0, 0] == (out, in), bias == (out,).
    """
    k1, k2, k3, k4, k5, k6 = jax.random.split(key, 6)
    s = 0.1
    wq = s * jax.random.normal(k1, (C, C_q), dtype)   # conv_query.weight[:, :, 0, 0]
    bq = s * jax.random.normal(k2, (C,), dtype)       # conv_query.bias
    wx = s * jax.random.normal(k3, (C, C), dtype)     # conv_x.weight[:, :, 0, 0]
    bx = s * jax.random.normal(k4, (C,), dtype)       # conv_x.bias
    wg = s * jax.random.normal(k5, (1, C), dtype)     # conv_gate.weight[:, :, 0, 0]
    bg = s * jax.random.normal(k6, (1,), dtype)       # conv_gate.bias
    return wq, bq, wx, bx, wg, bg


def unet_attention_ref(q, x, params):
    """Pure-JAX reference mirroring the PyTorch forward."""
    wq, bq, wx, bx, wg, bg = params
    cq = jnp.einsum('btqhw,cq->btchw', q, wq) + bq[None, None, :, None, None]
    cx = jnp.einsum('btdhw,cd->btchw', x, wx) + bx[None, None, :, None, None]
    v = jax.nn.relu(cq + cx)
    g = jnp.einsum('btchw,oc->btohw', v, wg) + bg[None, None, :, None, None]
    g = jax.nn.sigmoid(g)
    return x * g


if __name__ == "__main__":
    B, T, C_q, C, H, W = 2, 2, 32, 16, 8, 8
    key = jax.random.PRNGKey(0)
    kq, kx, kp = jax.random.split(key, 3)
    q = jax.random.normal(kq, (B, T, C_q, H, W), jnp.float32)
    x = jax.random.normal(kx, (B, T, C, H, W), jnp.float32)
    params = init_params(kp, C_q, C)

    # f32 path: exact match to the pure-JAX reference.
    y = jax.block_until_ready(unet_attention(q, x, params))
    y_ref = unet_attention_ref(q, x, params)
    assert y.shape == (B, T, C, H, W)
    assert jnp.allclose(y, y_ref, atol=1e-5, rtol=1e-5), "f32 mismatch vs reference"

    # bf16 I/O path: halves HBM traffic; accumulation/gate math stay f32 in-kernel.
    y_bf = jax.block_until_ready(
        unet_attention(q.astype(jnp.bfloat16), x.astype(jnp.bfloat16), params))
    assert y_bf.dtype == jnp.bfloat16
    assert jnp.allclose(y_bf.astype(jnp.float32), y_ref, atol=5e-2, rtol=5e-2), \
        "bf16 mismatch vs reference"

    print("KERNEL_OK")
</pallas_src>

<mosaic_0001>
module attributes {stable_mosaic.version = 11 : i64} {
  func.func @_unet_attention_kernel(%arg0: i32, %arg1: i32, %arg2: memref<2x32x64xf32, #tpu.memory_space<vmem>>, %arg3: memref<2x16x64xf32, #tpu.memory_space<vmem>>, %arg4: memref<16x32xf32, #tpu.memory_space<vmem>>, %arg5: memref<16x16xf32, #tpu.memory_space<vmem>>, %arg6: memref<16x1xf32, #tpu.memory_space<vmem>>, %arg7: memref<16x1xf32, #tpu.memory_space<vmem>>, %arg8: memref<1x1xf32, #tpu.memory_space<vmem>>, %arg9: memref<2x16x64xf32, #tpu.memory_space<vmem>>) attributes {dimension_semantics = [#tpu.dimension_semantics<parallel>, #tpu.dimension_semantics<parallel>], iteration_bounds = array<i64: 2, 1>, scalar_prefetch = 0 : i64, scratch_operands = 0 : i64, tpu.core_type = #tpu.core_type<tc>, window_params = [{transform_indices = @transform_0, window_bounds = array<i64: 2, 32, 64>}, {transform_indices = @transform_1, window_bounds = array<i64: 2, 16, 64>}, {pipeline_mode = #tpu.pipeline_mode<synchronous>, transform_indices = @transform_2, window_bounds = array<i64: 16, 32>}, {pipeline_mode = #tpu.pipeline_mode<synchronous>, transform_indices = @transform_3, window_bounds = array<i64: 16, 16>}, {pipeline_mode = #tpu.pipeline_mode<synchronous>, transform_indices = @transform_4, window_bounds = array<i64: 16, 1>}, {pipeline_mode = #tpu.pipeline_mode<synchronous>, transform_indices = @transform_5, window_bounds = array<i64: 16, 1>}, {pipeline_mode = #tpu.pipeline_mode<synchronous>, transform_indices = @transform_6, window_bounds = array<i64: 1, 1>}, {transform_indices = @transform_7, window_bounds = array<i64: 2, 16, 64>}]} {
    %c0 = arith.constant 0 : index
    %c0_0 = arith.constant 0 : index
    %0 = vector.load %arg4[%c0, %c0_0] : memref<16x32xf32, #tpu.memory_space<vmem>>, vector<16x32xf32>
    %c0_1 = arith.constant 0 : index
    %c0_2 = arith.constant 0 : index
    %1 = vector.load %arg5[%c0_1, %c0_2] : memref<16x16xf32, #tpu.memory_space<vmem>>, vector<16x16xf32>
    %c0_3 = arith.constant 0 : index
    %c0_4 = arith.constant 0 : index
    %2 = vector.load %arg6[%c0_3, %c0_4] : memref<16x1xf32, #tpu.memory_space<vmem>>, vector<16x1xf32>
    %c0_5 = arith.constant 0 : index
    %c0_6 = arith.constant 0 : index
    %3 = vector.load %arg7[%c0_5, %c0_6] : memref<16x1xf32, #tpu.memory_space<vmem>>, vector<16x1xf32>
    %c0_7 = arith.constant 0 : index
    %c0_8 = arith.constant 0 : index
    %4 = vector.load %arg8[%c0_7, %c0_8] : memref<1x1xf32, #tpu.memory_space<vmem>>, vector<1x1xf32>
    %c0_9 = arith.constant 0 : index
    %c0_10 = arith.constant 0 : index
    %c0_11 = arith.constant 0 : index
    %5 = vector.load %arg2[%c0_9, %c0_10, %c0_11] : memref<2x32x64xf32, #tpu.memory_space<vmem>>, vector<1x32x64xf32>
    %6 = vector.shape_cast %5 : vector<1x32x64xf32> to vector<32x64xf32>
    %c0_12 = arith.constant 0 : index
    %c0_13 = arith.constant 0 : index
    %c0_14 = arith.constant 0 : index
    %7 = vector.load %arg3[%c0_12, %c0_13, %c0_14] : memref<2x16x64xf32, #tpu.memory_space<vmem>>, vector<1x16x64xf32>
    %8 = vector.shape_cast %7 : vector<1x16x64xf32> to vector<16x64xf32>
    %cst = arith.constant dense<0.000000e+00> : vector<16x64xf32>
    %9 = tpu.matmul %0, %6, %cst {dimension_numbers = #tpu.dot_dimension_numbers<[1], [0], [0], [1], [0, 0, 1, 1], [], []>} : vector<16x32xf32>, vector<32x64xf32>, vector<16x64xf32> -> vector<16x64xf32>
    %cst_15 = arith.constant dense<0.000000e+00> : vector<16x64xf32>
    %10 = tpu.matmul %1, %8, %cst_15 {dimension_numbers = #tpu.dot_dimension_numbers<[1], [0], [0], [1], [0, 0, 1, 1], [], []>} : vector<16x16xf32>, vector<16x64xf32>, vector<16x64xf32> -> vector<16x64xf32>
    %11 = arith.addf %9, %10 : vector<16x64xf32>
    %12 = vector.broadcast %2 : vector<16x1xf32> to vector<16x64xf32>
    %13 = arith.addf %11, %12 : vector<16x64xf32>
    %cst_16 = arith.constant 0.000000e+00 : f32
    %14 = vector.broadcast %cst_16 : f32 to vector<16x64xf32>
    %15 = arith.maximumf %13, %14 : vector<16x64xf32>
    %16 = vector.broadcast %3 : vector<16x1xf32> to vector<16x64xf32>
    %17 = arith.mulf %15, %16 : vector<16x64xf32>
    %cst_17 = arith.constant dense<0.000000e+00> : vector<64xf32>
    %18 = vector.multi_reduction <add>, %17, %cst_17 [0] : vector<16x64xf32> to vector<64xf32>
    %19 = vector.shape_cast %18 : vector<64xf32> to vector<1x64xf32>
    %20 = vector.broadcast %4 : vector<1x1xf32> to vector<1x64xf32>
    %21 = arith.addf %19, %20 : vector<1x64xf32>
    %22 = arith.negf %21 : vector<1x64xf32>
    %23 = math.exp %22 : vector<1x64xf32>
    %cst_18 = arith.constant 1.000000e+00 : f32
    %24 = vector.broadcast %cst_18 : f32 to vector<1x64xf32>
    %25 = arith.addf %24, %23 : vector<1x64xf32>
    %26 = arith.divf %24, %25 : vector<1x64xf32>
    %27 = vector.broadcast %26 : vector<1x64xf32> to vector<16x64xf32>
    %28 = arith.mulf %8, %27 : vector<16x64xf32>
    %c0_19 = arith.constant 0 : index
    %c0_20 = arith.constant 0 : index
    %c0_21 = arith.constant 0 : index
    %29 = vector.load %arg9[%c0_19, %c0_20, %c0_21] : memref<2x16x64xf32, #tpu.memory_space<vmem>>, vector<1x16x64xf32>
    %30 = vector.shape_cast %29 : vector<1x16x64xf32> to vector<16x64xf32>
    %31 = vector.shape_cast %28 : vector<16x64xf32> to vector<1x16x64xf32>
    tpu.vector_store %arg9[%c0_19, %c0_20, %c0_21], %31 {strides = array<i32>} : memref<2x16x64xf32, #tpu.memory_space<vmem>>, vector<1x16x64xf32>,
    %c1 = arith.constant 1 : index
    %c0_22 = arith.constant 0 : index
    %c0_23 = arith.constant 0 : index
    %32 = vector.load %arg2[%c1, %c0_22, %c0_23] : memref<2x32x64xf32, #tpu.memory_space<vmem>>, vector<1x32x64xf32>
    %33 = vector.shape_cast %32 : vector<1x32x64xf32> to vector<32x64xf32>
    %c1_24 = arith.constant 1 : index
    %c0_25 = arith.constant 0 : index
    %c0_26 = arith.constant 0 : index
    %34 = vector.load %arg3[%c1_24, %c0_25, %c0_26] : memref<2x16x64xf32, #tpu.memory_space<vmem>>, vector<1x16x64xf32>
    %35 = vector.shape_cast %34 : vector<1x16x64xf32> to vector<16x64xf32>
    %cst_27 = arith.constant dense<0.000000e+00> : vector<16x64xf32>
    %36 = tpu.matmul %0, %33, %cst_27 {dimension_numbers = #tpu.dot_dimension_numbers<[1], [0], [0], [1], [0, 0, 1, 1], [], []>} : vector<16x32xf32>, vector<32x64xf32>, vector<16x64xf32> -> vector<16x64xf32>
    %cst_28 = arith.constant dense<0.000000e+00> : vector<16x64xf32>
    %37 = tpu.matmul %1, %35, %cst_28 {dimension_numbers = #tpu.dot_dimension_numbers<[1], [0], [0], [1], [0, 0, 1, 1], [], []>} : vector<16x16xf32>, vector<16x64xf32>, vector<16x64xf32> -> vector<16x64xf32>
    %38 = arith.addf %36, %37 : vector<16x64xf32>
    %39 = vector.broadcast %2 : vector<16x1xf32> to vector<16x64xf32>
    %40 = arith.addf %38, %39 : vector<16x64xf32>
    %cst_29 = arith.constant 0.000000e+00 : f32
    %41 = vector.broadcast %cst_29 : f32 to vector<16x64xf32>
    %42 = arith.maximumf %40, %41 : vector<16x64xf32>
    %43 = vector.broadcast %3 : vector<16x1xf32> to vector<16x64xf32>
    %44 = arith.mulf %42, %43 : vector<16x64xf32>
    %cst_30 = arith.constant dense<0.000000e+00> : vector<64xf32>
    %45 = vector.multi_reduction <add>, %44, %cst_30 [0] : vector<16x64xf32> to vector<64xf32>
    %46 = vector.shape_cast %45 : vector<64xf32> to vector<1x64xf32>
    %47 = vector.broadcast %4 : vector<1x1xf32> to vector<1x64xf32>
    %48 = arith.addf %46, %47 : vector<1x64xf32>
    %49 = arith.negf %48 : vector<1x64xf32>
    %50 = math.exp %49 : vector<1x64xf32>
    %cst_31 = arith.constant 1.000000e+00 : f32
    %51 = vector.broadcast %cst_31 : f32 to vector<1x64xf32>
    %52 = arith.addf %51, %50 : vector<1x64xf32>
    %53 = arith.divf %51, %52 : vector<1x64xf32>
    %54 = vector.broadcast %53 : vector<1x64xf32> to vector<16x64xf32>
    %55 = arith.mulf %35, %54 : vector<16x64xf32>
    %c1_32 = arith.constant 1 : index
    %c0_33 = arith.constant 0 : index
    %c0_34 = arith.constant 0 : index
    %56 = vector.load %arg9[%c1_32, %c0_33, %c0_34] : memref<2x16x64xf32, #tpu.memory_space<vmem>>, vector<1x16x64xf32>
    %57 = vector.shape_cast %56 : vector<1x16x64xf32> to vector<16x64xf32>
    %58 = vector.shape_cast %55 : vector<16x64xf32> to vector<1x16x64xf32>
    tpu.vector_store %arg9[%c1_32, %c0_33, %c0_34], %58 {strides = array<i32>} : memref<2x16x64xf32, #tpu.memory_space<vmem>>, vector<1x16x64xf32>,
    return
  }
  func.func @transform_0(%arg0: i32, %arg1: i32) -> (i32, i32, i32) {
    %c0_i32 = arith.constant 0 : i32
    %c0_i32_0 = arith.constant 0 : i32
    return %arg0, %c0_i32, %arg1 : i32, i32, i32
  }
  func.func @transform_1(%arg0: i32, %arg1: i32) -> (i32, i32, i32) {
    %c0_i32 = arith.constant 0 : i32
    %c0_i32_0 = arith.constant 0 : i32
    return %arg0, %c0_i32, %arg1 : i32, i32, i32
  }
  func.func @transform_2(%arg0: i32, %arg1: i32) -> (i32, i32) {
    %c0_i32 = arith.constant 0 : i32
    %c0_i32_0 = arith.constant 0 : i32
    %c0_i32_1 = arith.constant 0 : i32
    return %c0_i32, %c0_i32_0 : i32, i32
  }
  func.func @transform_3(%arg0: i32, %arg1: i32) -> (i32, i32) {
    %c0_i32 = arith.constant 0 : i32
    %c0_i32_0 = arith.constant 0 : i32
    %c0_i32_1 = arith.constant 0 : i32
    return %c0_i32, %c0_i32_0 : i32, i32
  }
  func.func @transform_4(%arg0: i32, %arg1: i32) -> (i32, i32) {
    %c0_i32 = arith.constant 0 : i32
    %c0_i32_0 = arith.constant 0 : i32
    %c0_i32_1 = arith.constant 0 : i32
    return %c0_i32, %c0_i32_0 : i32, i32
  }
  func.func @transform_5(%arg0: i32, %arg1: i32) -> (i32, i32) {
    %c0_i32 = arith.constant 0 : i32
    %c0_i32_0 = arith.constant 0 : i32
    %c0_i32_1 = arith.constant 0 : i32
    return %c0_i32, %c0_i32_0 : i32, i32
  }
  func.func @transform_6(%arg0: i32, %arg1: i32) -> (i32, i32) {
    %c0_i32 = arith.constant 0 : i32
    %c0_i32_0 = arith.constant 0 : i32
    %c0_i32_1 = arith.constant 0 : i32
    return %c0_i32, %c0_i32_0 : i32, i32
  }
  func.func @transform_7(%arg0: i32, %arg1: i32) -> (i32, i32, i32) {
    %c0_i32 = arith.constant 0 : i32
    %c0_i32_0 = arith.constant 0 : i32
    return %arg0, %c0_i32, %arg1 : i32, i32, i32
  }
}

</mosaic_0001>

<llo_original>
// kernel: tpu_custom_call.1
$region0: #{tpu_custom_call.1}
  #allocation0 [shape = 'u32[]', space=smem, size = 0x4, offset = 0x4, fixed_abs, tag = 'smem constant byte address 0x4 - core index']
  #allocation1 [shape = 'u32[144,128]{1,0:T(1,128)}', space=vmem, size = 0x12000, scoped, tag = 'internal scratch']
  #allocation2 [shape = 'f32[1,1]{1,0:T(1,128)S(1)}', space=vmem, size = 0x200, scoped, tag = 'scoped memory for tpu_custom_call.1']
  %s0 = inlined_call_operand.hbm [shape: f32[4,32,64], index: 0, kind: input, shape index: {}]
  %s1 = inlined_call_operand.hbm [shape: f32[4,16,64], index: 1, kind: input, shape index: {}]
  %s2 = inlined_call_operand.vmem [shape: f32[16,32], index: 2, kind: input, shape index: {}]
  %s3 = inlined_call_operand.vmem [shape: f32[16,16], index: 3, kind: input, shape index: {}]
  %s4 = inlined_call_operand.vmem [shape: f32[16,1], index: 4, kind: input, shape index: {}]
  %s5 = inlined_call_operand.vmem [shape: f32[16,1], index: 5, kind: input, shape index: {}]
  %s6 = inlined_call_operand.<no memory space> [shape: f32[1,1], index: 6, kind: input, shape index: {}]
  %s7 = inlined_call_operand.hbm [shape: f32[4,16,64], index: 7, kind: output, shape index: {}]
  %s8 = sld [smem:[#allocation0]]
  $region69: #{tpu_custom_call.1} parent=0
    _
  %s10 = ssub.s32 1, %s8
  %s11 = scalar_select 0, %s10, %s8
  %v12 = vstv %s6
  %13 = vst [vmem:[#allocation2] sm:$0x1] %v12
  $region1: #{tpu_custom_call.1} parent=0
    #allocation3 [shape = 'u8[65536]{0}', space=vmem, size = 0x10000, scoped, tag = 'input window, operand 0']
    #allocation4 [shape = 's32[2]{0}', space=sflag, size = 0x8, scoped, tag = 'scoped memory for tpu_custom_call.1']
    #allocation5 [shape = 's32[2]{0}', space=sflag, size = 0x8, scoped, tag = 'scoped memory for tpu_custom_call.1']
    #allocation6 [shape = 'u8[32768]{0}', space=vmem, size = 0x8000, scoped, tag = 'input window, operand 1']
    #allocation7 [shape = 's32[2]{0}', space=sflag, size = 0x8, scoped, tag = 'scoped memory for tpu_custom_call.1']
    #allocation8 [shape = 'u8[32768]{0}', space=vmem, size = 0x8000, scoped, tag = 'output window, operand 0']
    %14 = vsyncpa [#allocation4], 0
    %s15 = scalar_lea.sflag [#allocation4], 1
    %16 = vsyncpa %s15, 0
    %17 = vsyncpa [#allocation7], 0
    %s18 = scalar_lea.sflag [#allocation7], 1
    %19 = vsyncpa %s18, 0
    %20 = vsyncpa [#allocation5], 0
    %s21 = scalar_lea.sflag [#allocation5], 1
    %22 = vsyncpa %s21, 0
    loop: start=0, step=1, limit=4
    $region2: #{tpu_custom_call.1} parent=1 // loop_pre_header
      _
    $region3: #{tpu_custom_call.1} parent=1 // loop_header
      %s24 = sphi 0, %s28
      %p25 = scmp.ge.s32.totalorder %s24, 4
      %s31 = sphi 0, %s43
      %s32 = sphi 0, %s39
      %s33 = sphi 0, %s31
      %s34 = sphi 0, %s32
      %s35 = sphi 0, %s33
      %s36 = sphi 0, %s34
      %s48 = sphi 0, %s50
      %s51 = sphi 0, %s48
      %s52 = sphi 0, %s51
      %s68 = sphi 0, %s52
      %s76 = sphi 0, %s78
      %s79 = sphi 0, %s76
      %s80 = sphi 0, %s79
      %s96 = sphi 0, %s80
      %s100 = sphi 0, %s100
      %s102 = sphi 0, %s100
      %s103 = sphi 0, %s102
      %s117 = sphi 0, %s103
      %s121 = sphi 0, %s121
      %s123 = sphi 0, %s121
      %s124 = sphi 0, %s123
      %s138 = sphi 0, %s124
      %s142 = sphi 0, %s142
      %s144 = sphi 0, %s142
      %s145 = sphi 0, %s144
      %s159 = sphi 0, %s145
      %s163 = sphi 0, %s163
      %s165 = sphi 0, %s163
      %s166 = sphi 0, %s165
      %s180 = sphi 0, %s166
      %s184 = sphi 0, %s184
      %s186 = sphi 0, %s184
      %s187 = sphi 0, %s186
      %s201 = sphi 0, %s187
      %s209 = sphi 0, %s211
      %s212 = sphi 0, %s209
      %s213 = sphi 0, %s212
      %s229 = sphi 0, %s213
    $region4: #{tpu_custom_call.1} parent=1 // loop_header_branch
      %27 = sbr.rel (%p25) target = $region8
    $region5: #{tpu_custom_call.1} parent=1 // loop_body
      %s29 = ssub.s32 %s24, 1
      %s30 = ssub.s32 %s24, 2
      %s37 = sadd.s32 1, %s32
      %p38 = scmp.ge.s32.totalorder %s37, 1
      %s39 = scalar_select %p38, 0, %s37
      %s40 = sadd.s32 1, %s31
      %s41 = scalar_select %p38, %s40, %s31
      %p42 = scmp.ge.s32.totalorder %s41, 2
      %s43 = scalar_select %p42, 0, %s41
      %s44 = ssub.s32 %s31, %s43
      %s45 = ssub.s32 %s32, %s39
      %s46 = sor.u32 %s44, %s45
      %p47 = scmp.eq.s32.totalorder %s46, 0
      %s49 = sadd.s32 %s48, 1
      %s50 = scalar_select %p47, %s48, %s49
      %p53 = pneg %p47
      %p54 = scmp.eq.s32.totalorder %s24, 1
      %p55 = por %p53, %p54
      %p56 = scmp.ne.s32.totalorder %s48, %s51
      %p57 = scmp.eq.s32.totalorder %s24, 0
      %p58 = por %p56, %p57
      %p59 = scmp.ne.s32.totalorder %s48, %s51
      %p60 = scmp.eq.s32.totalorder %s29, 1
      %p61 = por %p59, %p60
      %p62 = scmp.ne.s32.totalorder %s51, %s52
      %p63 = scmp.eq.s32.totalorder %s29, 0
      %p64 = por %p62, %p63
      %p65 = scmp.ne.s32.totalorder %s51, %s52
      %p66 = scmp.eq.s32.totalorder %s30, 1
      %p67 = por %p65, %p66
      %p69 = scmp.ne.s32.totalorder %s52, %s68
      %p70 = scmp.eq.s32.totalorder %s30, 0
      %p71 = por %p69, %p70
      %s72 = ssub.s32 %s31, %s43
      %s73 = ssub.s32 %s32, %s39
      %s74 = sor.u32 %s72, %s73
      %p75 = scmp.eq.s32.totalorder %s74, 0
      %s77 = sadd.s32 %s76, 1
      %s78 = scalar_select %p75, %s76, %s77
      %p81 = pneg %p75
      %p82 = scmp.eq.s32.totalorder %s24, 1
      %p83 = por %p81, %p82
      %p84 = scmp.ne.s32.totalorder %s76, %s79
      %p85 = scmp.eq.s32.totalorder %s24, 0
      %p86 = por %p84, %p85
      %p87 = scmp.ne.s32.totalorder %s76, %s79
      %p88 = scmp.eq.s32.totalorder %s29, 1
      %p89 = por %p87, %p88
      %p90 = scmp.ne.s32.totalorder %s79, %s80
      %p91 = scmp.eq.s32.totalorder %s29, 0
      %p92 = por %p90, %p91
      %p93 = scmp.ne.s32.totalorder %s79, %s80
      %p94 = scmp.eq.s32.totalorder %s30, 1
      %p95 = por %p93, %p94
      %p97 = scmp.ne.s32.totalorder %s80, %s96
      %p98 = scmp.eq.s32.totalorder %s30, 0
      %p99 = por %p97, %p98
      %s101 = sadd.s32 %s100, 1
      %p104 = scmp.eq.s32.totalorder %s24, 1
      %p105 = scmp.ne.s32.totalorder %s100, %s102
      %p106 = scmp.eq.s32.totalorder %s24, 0
      %p107 = por %p105, %p106
      %p108 = scmp.ne.s32.totalorder %s100, %s102
      %p109 = scmp.eq.s32.totalorder %s29, 1
      %p110 = por %p108, %p109
      %p111 = scmp.ne.s32.totalorder %s102, %s103
      %p112 = scmp.eq.s32.totalorder %s29, 0
      %p113 = por %p111, %p112
      %p114 = scmp.ne.s32.totalorder %s102, %s103
      %p115 = scmp.eq.s32.totalorder %s30, 1
      %p116 = por %p114, %p115
      %p118 = scmp.ne.s32.totalorder %s103, %s117
      %p119 = scmp.eq.s32.totalorder %s30, 0
      %p120 = por %p118, %p119
      %s122 = sadd.s32 %s121, 1
      %p125 = scmp.eq.s32.totalorder %s24, 1
      %p126 = scmp.ne.s32.totalorder %s121, %s123
      %p127 = scmp.eq.s32.totalorder %s24, 0
      %p128 = por %p126, %p127
      %p129 = scmp.ne.s32.totalorder %s121, %s123
      %p130 = scmp.eq.s32.totalorder %s29, 1
      %p131 = por %p129, %p130
      %p132 = scmp.ne.s32.totalorder %s123, %s124
      %p133 = scmp.eq.s32.totalorder %s29, 0
      %p134 = por %p132, %p133
      %p135 = scmp.ne.s32.totalorder %s123, %s124
      %p136 = scmp.eq.s32.totalorder %s30, 1
      %p137 = por %p135, %p136
      %p139 = scmp.ne.s32.totalorder %s124, %s138
      %p140 = scmp.eq.s32.totalorder %s30, 0
      %p141 = por %p139, %p140
      %s143 = sadd.s32 %s142, 1
      %p146 = scmp.eq.s32.totalorder %s24, 1
      %p147 = scmp.ne.s32.totalorder %s142, %s144
      %p148 = scmp.eq.s32.totalorder %s24, 0
      %p149 = por %p147, %p148
      %p150 = scmp.ne.s32.totalorder %s142, %s144
      %p151 = scmp.eq.s32.totalorder %s29, 1
      %p152 = por %p150, %p151
      %p153 = scmp.ne.s32.totalorder %s144, %s145
      %p154 = scmp.eq.s32.totalorder %s29, 0
      %p155 = por %p153, %p154
      %p156 = scmp.ne.s32.totalorder %s144, %s145
      %p157 = scmp.eq.s32.totalorder %s30, 1
      %p158 = por %p156, %p157
      %p160 = scmp.ne.s32.totalorder %s145, %s159
      %p161 = scmp.eq.s32.totalorder %s30, 0
      %p162 = por %p160, %p161
      %s164 = sadd.s32 %s163, 1
      %p167 = scmp.eq.s32.totalorder %s24, 1
      %p168 = scmp.ne.s32.totalorder %s163, %s165
      %p169 = scmp.eq.s32.totalorder %s24, 0
      %p170 = por %p168, %p169
      %p171 = scmp.ne.s32.totalorder %s163, %s165
      %p172 = scmp.eq.s32.totalorder %s29, 1
      %p173 = por %p171, %p172
      %p174 = scmp.ne.s32.totalorder %s165, %s166
      %p175 = scmp.eq.s32.totalorder %s29, 0
      %p176 = por %p174, %p175
      %p177 = scmp.ne.s32.totalorder %s165, %s166
      %p178 = scmp.eq.s32.totalorder %s30, 1
      %p179 = por %p177, %p178
      %p181 = scmp.ne.s32.totalorder %s166, %s180
      %p182 = scmp.eq.s32.totalorder %s30, 0
      %p183 = por %p181, %p182
      %s185 = sadd.s32 %s184, 1
      %p188 = scmp.eq.s32.totalorder %s24, 1
      %p189 = scmp.ne.s32.totalorder %s184, %s186
      %p190 = scmp.eq.s32.totalorder %s24, 0
      %p191 = por %p189, %p190
      %p192 = scmp.ne.s32.totalorder %s184, %s186
      %p193 = scmp.eq.s32.totalorder %s29, 1
      %p194 = por %p192, %p193
      %p195 = scmp.ne.s32.totalorder %s186, %s187
      %p196 = scmp.eq.s32.totalorder %s29, 0
      %p197 = por %p195, %p196
      %p198 = scmp.ne.s32.totalorder %s186, %s187
      %p199 = scmp.eq.s32.totalorder %s30, 1
      %p200 = por %p198, %p199
      %p202 = scmp.ne.s32.totalorder %s187, %s201
      %p203 = scmp.eq.s32.totalorder %s30, 0
      %p204 = por %p202, %p203
      %s205 = ssub.s32 %s31, %s43
      %s206 = ssub.s32 %s32, %s39
      %s207 = sor.u32 %s205, %s206
      %p208 = scmp.eq.s32.totalorder %s207, 0
      %s210 = sadd.s32 %s209, 1
      %s211 = scalar_select %p208, %s209, %s210
      %p214 = pneg %p208
      %p215 = scmp.eq.s32.totalorder %s24, 1
      %p216 = por %p214, %p215
      %p217 = scmp.ne.s32.totalorder %s209, %s212
      %p218 = scmp.eq.s32.totalorder %s24, 0
      %p219 = por %p217, %p218
      %p220 = scmp.ne.s32.totalorder %s209, %s212
      %p221 = scmp.eq.s32.totalorder %s29, 1
      %p222 = por %p220, %p221
      %p223 = scmp.ne.s32.totalorder %s212, %s213
      %p224 = scmp.eq.s32.totalorder %s29, 0
      %p225 = por %p223, %p224
      %p226 = scmp.ne.s32.totalorder %s212, %s213
      %p227 = scmp.eq.s32.totalorder %s30, 1
      %p228 = por %p226, %p227
      %p230 = scmp.ne.s32.totalorder %s213, %s229
      %p231 = scmp.eq.s32.totalorder %s30, 0
      %p232 = por %p230, %p231
      %p233 = scmp.le.s32.totalorder 1, %s24
      %p234 = scmp.lt.s32.totalorder %s24, 3
      %p235 = pnand %p233, %p234
      %p236 = pneg %p235
      // Predicated region
      $region9: #{tpu_custom_call.1} parent=5 // pred_check
        _
      $region10: #{tpu_custom_call.1} parent=5 // pred_check_branch
        %238 = sbr.rel (%p235) target = $region12
      $region11: #{tpu_custom_call.1} parent=5 // pred_region
        %s239 = ssub.s32 %s24, 1
        // Predicated region
        $region13: #{tpu_custom_call.1} parent=11 // pred_check
          %p240 = pneg %p113
        $region14: #{tpu_custom_call.1} parent=11 // pred_check_branch
          %242 = sbr.rel (%p240) target = $region16
        $region15: #{tpu_custom_call.1} parent=11 // pred_region
          _
        $region16: #{tpu_custom_call.1} parent=11 // pred_fallthru
          _
        // Predicated region
        $region17: #{tpu_custom_call.1} parent=11 // pred_check
          %p243 = pneg %p134
        $region18: #{tpu_custom_call.1} parent=11 // pred_check_branch
          %245 = sbr.rel (%p243) target = $region20
        $region19: #{tpu_custom_call.1} parent=11 // pred_region
          _
        $region20: #{tpu_custom_call.1} parent=11 // pred_fallthru
          _
        // Predicated region
        $region21: #{tpu_custom_call.1} parent=11 // pred_check
          %p246 = pneg %p155
        $region22: #{tpu_custom_call.1} parent=11 // pred_check_branch
          %248 = sbr.rel (%p246) target = $region24
        $region23: #{tpu_custom_call.1} parent=11 // pred_region
          _
        $region24: #{tpu_custom_call.1} parent=11 // pred_fallthru
          _
        // Predicated region
        $region25: #{tpu_custom_call.1} parent=11 // pred_check
          %p249 = pneg %p176
        $region26: #{tpu_custom_call.1} parent=11 // pred_check_branch
          %251 = sbr.rel (%p249) target = $region28
        $region27: #{tpu_custom_call.1} parent=11 // pred_region
          _
        $region28: #{tpu_custom_call.1} parent=11 // pred_fallthru
          _
        // Predicated region
        $region29: #{tpu_custom_call.1} parent=11 // pred_check
          %p252 = pneg %p197
        $region30: #{tpu_custom_call.1} parent=11 // pred_check_branch
          %254 = sbr.rel (%p252) target = $region32
        $region31: #{tpu_custom_call.1} parent=11 // pred_region
          _
        $region32: #{tpu_custom_call.1} parent=11 // pred_fallthru
          _
      $region12: #{tpu_custom_call.1} parent=5 // pred_fallthru
        _
      %p255 = scmp.lt.s32.totalorder %s24, 2
      // Predicated region
      $region33: #{tpu_custom_call.1} parent=5 // pred_check
        %p256 = pneg %p255
      $region34: #{tpu_custom_call.1} parent=5 // pred_check_branch
        %258 = sbr.rel (%p256) target = $region36
      $region35: #{tpu_custom_call.1} parent=5 // pred_region
        // Predicated region
        $region37: #{tpu_custom_call.1} parent=35 // pred_check
          %p259 = pneg %p58
        $region38: #{tpu_custom_call.1} parent=35 // pred_check_branch
          %261 = sbr.rel (%p259) target = $region40
        $region39: #{tpu_custom_call.1} parent=35 // pred_region
          %s262 = sand.u32 %s48, 1
          %s263 = scalar_lea.sflag [#allocation4], %s262
          %s264 = sand.u32 %s48, 1
          %s265 = smul.addr %s264, 64
          %s266 = scalar_lea.vmem [#allocation3], %s265
          %s267 = smul.u32 2, %s31
          %s269 = ssub.s32 1024, 1024
          %270 = vsyncadd %s263, %s269
          %s271 = smul.addr %s267, 4
          %s272 = sadd.s32 %s32, %s271
          %s273 = smul.addr %s272, 128
          %s274 = scalar_lea.hbm %s0, %s273
          %s275 = sshll.u32 %s266, 4
          %s276 = int_to_ptr.vmem [resolvable:$true] %s275
          %281 = dma.hbm_to_vmem [thread:$0]  %s274, 1024, %s276, %s263, 128, 128, 8
        $region40: #{tpu_custom_call.1} parent=35 // pred_fallthru
          _
        // Predicated region
        $region41: #{tpu_custom_call.1} parent=35 // pred_check
          %p282 = pneg %p86
        $region42: #{tpu_custom_call.1} parent=35 // pred_check_branch
          %284 = sbr.rel (%p282) target = $region44
        $region43: #{tpu_custom_call.1} parent=35 // pred_region
          %s285 = sand.u32 %s76, 1
          %s286 = scalar_lea.sflag [#allocation7], %s285
          %s287 = sand.u32 %s76, 1
          %s288 = smul.addr %s287, 32
          %s289 = scalar_lea.vmem [#allocation6], %s288
          %s290 = smul.u32 2, %s31
          %s292 = ssub.s32 512, 512
          %293 = vsyncadd %s286, %s292
          %s294 = smul.addr %s290, 2
          %s295 = sadd.s32 %s32, %s294
          %s296 = smul.addr %s295, 128
          %s297 = scalar_lea.hbm %s1, %s296
          %s298 = sshll.u32 %s289, 4
          %s299 = int_to_ptr.vmem [resolvable:$true] %s298
          %304 = dma.hbm_to_vmem [thread:$0]  %s297, 512, %s299, %s286, 128, 128, 8
        $region44: #{tpu_custom_call.1} parent=35 // pred_fallthru
          _
      $region36: #{tpu_custom_call.1} parent=5 // pred_fallthru
        _
      %p305 = scmp.le.s32.totalorder 1, %s24
      %p306 = scmp.lt.s32.totalorder %s24, 3
      %p307 = pnand %p305, %p306
      %p308 = pneg %p307
      // Predicated region
      $region45: #{tpu_custom_call.1} parent=5 // pred_check
        _
      $region46: #{tpu_custom_call.1} parent=5 // pred_check_branch
        %310 = sbr.rel (%p307) target = $region48
      $region47: #{tpu_custom_call.1} parent=5 // pred_region
        %s311 = ssub.s32 %s24, 1
        %s312 = sand.u32 %s51, 1
        %s313 = scalar_lea.sflag [#allocation4], %s312
        %s314 = sand.u32 %s51, 1
        %s315 = smul.addr %s314, 64
        %s316 = scalar_lea.vmem [#allocation3], %s315
        // Predicated region
        $region49: #{tpu_custom_call.1} parent=47 // pred_check
          %p317 = pneg %p64
        $region50: #{tpu_custom_call.1} parent=47 // pred_check_branch
          %319 = sbr.rel (%p317) target = $region52
        $region51: #{tpu_custom_call.1} parent=47 // pred_region
          %320 = dma.done %s313, 1024
        $region52: #{tpu_custom_call.1} parent=47 // pred_fallthru
          _
        %s321 = sand.u32 %s79, 1
        %s322 = scalar_lea.sflag [#allocation7], %s321
        %s323 = sand.u32 %s79, 1
        %s324 = smul.addr %s323, 32
        %s325 = scalar_lea.vmem [#allocation6], %s324
        // Predicated region
        $region53: #{tpu_custom_call.1} parent=47 // pred_check
          %p326 = pneg %p92
        $region54: #{tpu_custom_call.1} parent=47 // pred_check_branch
          %328 = sbr.rel (%p326) target = $region56
        $region55: #{tpu_custom_call.1} parent=47 // pred_region
          %329 = dma.done %s322, 512
        $region56: #{tpu_custom_call.1} parent=47 // pred_fallthru
          _
        %s330 = sand.u32 %s51, 1
        %s331 = scalar_lea.sflag [#allocation4], %s330
        %s332 = sand.u32 %s51, 1
        %s333 = smul.addr %s332, 64
        %s334 = scalar_lea.vmem [#allocation3], %s333
        %p335 = pneg %p64
        %p336 = pneg %p61
        %s337 = sand.u32 %s79, 1
        %s338 = scalar_lea.sflag [#allocation7], %s337
        %s339 = sand.u32 %s79, 1
        %s340 = smul.addr %s339, 32
        %s341 = scalar_lea.vmem [#allocation6], %s340
        %p342 = pneg %p92
        %p343 = pneg %p89
        %p344 = pneg %p113
        %p345 = pneg %p110
        %p346 = pneg %p134
        %p347 = pneg %p131
        %p348 = pneg %p155
        %p349 = pneg %p152
        %p350 = pneg %p176
        %p351 = pneg %p173
        %p352 = pneg %p197
        %p353 = pneg %p194
        %p354 = pneg %p225
        %p355 = pneg %p222
        %s356 = sand.u32 %s212, 1
        %s357 = scalar_lea.sflag [#allocation5], %s356
        %s358 = sand.u32 %s212, 1
        %s359 = smul.addr %s358, 32
        %s360 = scalar_lea.vmem [#allocation8], %s359
        %s361 = smul.u32 2, %s33
        %s362 = smul.u32 2, %s33
        %s363 = smul.u32 2, %s33
        %v364 = vld [vmem:[%s2] sm:$0xff]
        %v365 = vld [vmem:[%s2 + $0x8] sm:$0xff]
        %v366 = vld [vmem:[%s3] sm:$0xff]
        %v367 = vld [vmem:[%s3 + $0x8] sm:$0xff]
        %v368 = vld [vmem:[%s4] sm:$0xff]
        %v369 = vld [vmem:[%s4 + $0x8] sm:$0xff]
        %v370 = vld [vmem:[%s5] sm:$0xff]
        %v371 = vld [vmem:[%s5 + $0x8] sm:$0xff]
        %v372 = vld [vmem:[#allocation2] sm:$0x1]
        %v373 = vld [vmem:[%s316] sm:$0xff]
        %v374 = vld [vmem:[%s316 + $0x8] sm:$0xff]
        %v375 = vld [vmem:[%s316 + $0x10] sm:$0xff]
        %v376 = vld [vmem:[%s316 + $0x18] sm:$0xff]
        %v377 = vld [vmem:[%s325] sm:$0xff]
        %v378 = vld [vmem:[%s325 + $0x8] sm:$0xff]
        %vm379 = vcmask 130048
        %v381 = vsel %vm379, %v366, 0
        %v384 = vsel %vm379, %v367, 0
        %386 = vmatprep.subr.mxu0 0.0
        %387 = vmatpush1.msra.mxu0 %v377
        %388 = vmatprep.subr.mxu0 0.0
        %389 = vmatpush1.msra.mxu0 %v378
        %390 = vmatprep.subr.mxu0 0.0
        %391 = vmatpush1.msra.mxu0 0.0
        %392 = vmatprep.subr.mxu0 0.0
        %393 = vmatpush1.msra.mxu0 0.0
        %394 = vmatprep.subr.mxu0 0.0
        %395 = vmatpush1.msra.mxu0 0.0
        %396 = vmatprep.subr.mxu0 0.0
        %397 = vmatpush1.msra.mxu0 0.0
        %398 = vmatprep.subr.mxu0 0.0
        %399 = vmatpush1.msra.mxu0 0.0
        %400 = vmatprep.subr.mxu0 0.0
        %401 = vmatpush1.msra.mxu0 0.0
        %402 = vmatprep.subr.mxu0 0.0
        %403 = vmatpush1.msra.mxu0 0.0
        %404 = vmatprep.subr.mxu0 0.0
        %405 = vmatpush1.msra.mxu0 0.0
        %406 = vmatprep.subr.mxu0 0.0
        %407 = vmatpush1.msra.mxu0 0.0
        %408 = vmatprep.subr.mxu0 0.0
        %409 = vmatpush1.msra.mxu0 0.0
        %410 = vmatprep.subr.mxu0 0.0
        %411 = vmatpush1.msra.mxu0 0.0
        %412 = vmatprep.subr.mxu0 0.0
        %413 = vmatpush1.msra.mxu0 0.0
        %414 = vmatprep.subr.mxu0 0.0
        %415 = vmatpush1.msra.mxu0 0.0
        %416 = vmatprep.subr.mxu0 0.0
        %417 = vmatpush1.msra.mxu0 0.0
        %418 = vmatprep.subr.mxu0 0.0
        %419 = vmatpush1.msra.mxu0 0.0
        %420 = vmatprep.subr.mxu0 0.0
        %421 = vmatpush1.msra.mxu0 0.0
        %422 = vmatprep.subr.mxu0 0.0
        %423 = vmatpush1.msra.mxu0 0.0
        %424 = vmatprep.subr.mxu0 0.0
        %425 = vmatpush1.msra.mxu0 0.0
        %426 = vmatprep.subr.mxu0 0.0
        %427 = vmatpush1.msra.mxu0 0.0
        %428 = vmatprep.subr.mxu0 0.0
        %429 = vmatpush1.msra.mxu0 0.0
        %430 = vmatprep.subr.mxu0 0.0
        %431 = vmatpush1.msra.mxu0 0.0
        %432 = vmatprep.subr.mxu0 0.0
        %433 = vmatpush1.msra.mxu0 0.0
        %434 = vmatprep.subr.mxu0 0.0
        %435 = vmatpush1.msra.mxu0 0.0
        %436 = vmatprep.subr.mxu0 0.0
        %437 = vmatpush1.msra.mxu0 0.0
        %438 = vmatprep.subr.mxu0 0.0
        %439 = vmatpush1.msra.mxu0 0.0
        %440 = vmatprep.subr.mxu0 0.0
        %441 = vmatpush1.msra.mxu0 0.0
        %442 = vmatprep.subr.mxu0 0.0
        %443 = vmatpush1.msra.mxu0 0.0
        %444 = vmatprep.subr.mxu0 0.0
        %445 = vmatpush1.msra.mxu0 0.0
        %446 = vmatprep.subr.mxu0 0.0
        %447 = vmatpush1.msra.mxu0 0.0
        %448 = vmatprep.subr.mxu0 0.0
        %449 = vmatpush1.msra.mxu0 0.0
        %450 = vmatprep.mubr.f32.mxu0 0.0
        %451 = vmatmul.mubr.f32.gmra.mrb[0].mxu0 %v381
        %v452 = vpop.f32.mrb[0].mxu0
        %v453 = vadd.f32 0.0, %v452
        %v454 = vpop.f32.mrb[0].mxu0
        %455 = vmatprep.mubr.f32.mxu0 0.0
        %456 = vmatmul.mubr.f32.gmra.mrb[0].mxu0 %v384
        %v457 = vpop.f32.mrb[0].mxu0
        %v458 = vadd.f32 0.0, %v457
        %v459 = vpop.f32.mrb[0].mxu0
        %460 = vdwg.mxu0
        %vm461 = vcmask 261120
        %v463 = vsel %vm461, %v364, 0
        %v466 = vsel %vm461, %v365, 0
        %468 = vmatprep.subr.mxu0 0.0
        %469 = vmatpush1.msra.mxu0 %v373
        %470 = vmatprep.subr.mxu0 0.0
        %471 = vmatpush1.msra.mxu0 %v374
        %472 = vmatprep.subr.mxu0 0.0
        %473 = vmatpush1.msra.mxu0 %v375
        %474 = vmatprep.subr.mxu0 0.0
        %475 = vmatpush1.msra.mxu0 %v376
        %476 = vmatprep.subr.mxu0 0.0
        %477 = vmatpush1.msra.mxu0 0.0
        %478 = vmatprep.subr.mxu0 0.0
        %479 = vmatpush1.msra.mxu0 0.0
        %480 = vmatprep.subr.mxu0 0.0
        %481 = vmatpush1.msra.mxu0 0.0
        %482 = vmatprep.subr.mxu0 0.0
        %483 = vmatpush1.msra.mxu0 0.0
        %484 = vmatprep.subr.mxu0 0.0
        %485 = vmatpush1.msra.mxu0 0.0
        %486 = vmatprep.subr.mxu0 0.0
        %487 = vmatpush1.msra.mxu0 0.0
        %488 = vmatprep.subr.mxu0 0.0
        %489 = vmatpush1.msra.mxu0 0.0
        %490 = vmatprep.subr.mxu0 0.0
        %491 = vmatpush1.msra.mxu0 0.0
        %492 = vmatprep.subr.mxu0 0.0
        %493 = vmatpush1.msra.mxu0 0.0
        %494 = vmatprep.subr.mxu0 0.0
        %495 = vmatpush1.msra.mxu0 0.0
        %496 = vmatprep.subr.mxu0 0.0
        %497 = vmatpush1.msra.mxu0 0.0
        %498 = vmatprep.subr.mxu0 0.0
        %499 = vmatpush1.msra.mxu0 0.0
        %500 = vmatprep.subr.mxu0 0.0
        %501 = vmatpush1.msra.mxu0 0.0
        %502 = vmatprep.subr.mxu0 0.0
        %503 = vmatpush1.msra.mxu0 0.0
        %504 = vmatprep.subr.mxu0 0.0
        %505 = vmatpush1.msra.mxu0 0.0
        %506 = vmatprep.subr.mxu0 0.0
        %507 = vmatpush1.msra.mxu0 0.0
        %508 = vmatprep.subr.mxu0 0.0
        %509 = vmatpush1.msra.mxu0 0.0
        %510 = vmatprep.subr.mxu0 0.0
        %511 = vmatpush1.msra.mxu0 0.0
        %512 = vmatprep.subr.mxu0 0.0
        %513 = vmatpush1.msra.mxu0 0.0
        %514 = vmatprep.subr.mxu0 0.0
        %515 = vmatpush1.msra.mxu0 0.0
        %516 = vmatprep.subr.mxu0 0.0
        %517 = vmatpush1.msra.mxu0 0.0
        %518 = vmatprep.subr.mxu0 0.0
        %519 = vmatpush1.msra.mxu0 0.0
        %520 = vmatprep.subr.mxu0 0.0
        %521 = vmatpush1.msra.mxu0 0.0
        %522 = vmatprep.subr.mxu0 0.0
        %523 = vmatpush1.msra.mxu0 0.0
        %524 = vmatprep.subr.mxu0 0.0
        %525 = vmatpush1.msra.mxu0 0.0
        %526 = vmatprep.subr.mxu0 0.0
        %527 = vmatpush1.msra.mxu0 0.0
        %528 = vmatprep.subr.mxu0 0.0
        %529 = vmatpush1.msra.mxu0 0.0
        %530 = vmatprep.subr.mxu0 0.0
        %531 = vmatpush1.msra.mxu0 0.0
        %532 = vmatprep.mubr.f32.mxu0 0.0
        %533 = vmatmul.mubr.f32.gmra.mrb[0].mxu0 %v463
        %v534 = vpop.f32.mrb[0].mxu0
        %v535 = vadd.f32 %v453, %v534
        %v536 = vpop.f32.mrb[0].mxu0
        %537 = vmatprep.mubr.f32.mxu0 0.0
        %538 = vmatmul.mubr.f32.gmra.mrb[0].mxu0 %v466
        %v539 = vpop.f32.mrb[0].mxu0
        %v540 = vadd.f32 %v458, %v539
        %v541 = vpop.f32.mrb[0].mxu0
        %542 = vdwg.mxu0
        %544 = vset.pattern.permute.xlu0 0
        %545 = vperm.xlu0 %544, %v368
        %v546 = vpop.permute.xlu0 %545
        %549 = vset.pattern.permute.xlu0 0
        %550 = vperm.xlu0 %549, %v369
        %v551 = vpop.permute.xlu0 %550
        %v553 = vadd.f32 %v535, %v546
        %v554 = vadd.f32 %v540, %v551
        %v555 = vmax.f32 %v553, 0.0
        %v556 = vmax.f32 %v554, 0.0
        %558 = vset.pattern.permute.xlu0 0
        %559 = vperm.xlu0 %558, %v370
        %v560 = vpop.permute.xlu0 %559
        %563 = vset.pattern.permute.xlu0 0
        %564 = vperm.xlu0 %563, %v371
        %v565 = vpop.permute.xlu0 %564
        %v567 = vmul.f32 %v555, %v560
        %v568 = vmul.f32 %v556, %v565
        %vm569 = vcmask 523264
        %v570 = vsel %vm569, %v567, 0.0
        %v571 = vsel %vm569, %v568, 0.0
        %v572 = vadd.f32 %v570, %v571
        %v573 = vrot.slane %v572, 4
        %v574 = vadd.f32 %v572, %v573
        %v575 = vrot.slane %v574, 2
        %v576 = vadd.f32 %v574, %v575
        %v577 = vrot.slane %v576, 1
        %v578 = vadd.f32 %v576, %v577
        %580 = vset.pattern.permute.xlu0 0
        %581 = vperm.xlu0 %580, %v372
        %v582 = vpop.permute.xlu0 %581
        %v584 = vlaneseq
        %v585 = vshrl.u32 %v584, 7
        %v586 = vsub.s32 0, %v585
        %v587 = vrot.slane %v582, %v586
        %v588 = vadd.f32 %v578, %v587
        %v589 = vxor.u32 %v588, 2147483648
        %v590 = vmul.f32 %v589, 1.442695
        %v591 = vpow.pop %v590
        %v592 = vadd.f32 %v591, 1.0
        %v593 = vrcp.pop %v592
        %v594 = vmul.f32 1.0, %v593
        %v595 = vmul.f32 %v377, %v594
        %v596 = vmul.f32 %v378, %v594
        %597 = vst.msk [vmem:[%s360] sm:$0xff] %vm569, %v595
        %598 = vst.msk [vmem:[%s360 + $0x8] sm:$0xff] %vm569, %v596
        %s599 = scalar_lea.vmem %s316, 32 [#allocation3]
        %v600 = vld [vmem:[%s599] sm:$0xff]
        %v601 = vld [vmem:[%s599 + $0x8] sm:$0xff]
        %v602 = vld [vmem:[%s599 + $0x10] sm:$0xff]
        %v603 = vld [vmem:[%s599 + $0x18] sm:$0xff]
        %s604 = scalar_lea.vmem %s325, 16 [#allocation6]
        %v605 = vld [vmem:[%s604] sm:$0xff]
        %v606 = vld [vmem:[%s604 + $0x8] sm:$0xff]
        %607 = vmatprep.subr.mxu0 0.0
        %608 = vmatpush1.msra.mxu0 %v605
        %609 = vmatprep.subr.mxu0 0.0
        %610 = vmatpush1.msra.mxu0 %v606
        %611 = vmatprep.subr.mxu0 0.0
        %612 = vmatpush1.msra.mxu0 0.0
        %613 = vmatprep.subr.mxu0 0.0
        %614 = vmatpush1.msra.mxu0 0.0
        %615 = vmatprep.subr.mxu0 0.0
        %616 = vmatpush1.msra.mxu0 0.0
        %617 = vmatprep.subr.mxu0 0.0
        %618 = vmatpush1.msra.mxu0 0.0
        %619 = vmatprep.subr.mxu0 0.0
        %620 = vmatpush1.msra.mxu0 0.0
        %621 = vmatprep.subr.mxu0 0.0
        %622 = vmatpush1.msra.mxu0 0.0
        %623 = vmatprep.subr.mxu0 0.0
        %624 = vmatpush1.msra.mxu0 0.0
        %625 = vmatprep.subr.mxu0 0.0
        %626 = vmatpush1.msra.mxu0 0.0
        %627 = vmatprep.subr.mxu0 0.0
        %628 = vmatpush1.msra.mxu0 0.0
        %629 = vmatprep.subr.mxu0 0.0
        %630 = vmatpush1.msra.mxu0 0.0
        %631 = vmatprep.subr.mxu0 0.0
        %632 = vmatpush1.msra.mxu0 0.0
        %633 = vmatprep.subr.mxu0 0.0
        %634 = vmatpush1.msra.mxu0 0.0
        %635 = vmatprep.subr.mxu0 0.0
        %636 = vmatpush1.msra.mxu0 0.0
        %637 = vmatprep.subr.mxu0 0.0
        %638 = vmatpush1.msra.mxu0 0.0
        %639 = vmatprep.subr.mxu0 0.0
        %640 = vmatpush1.msra.mxu0 0.0
        %641 = vmatprep.subr.mxu0 0.0
        %642 = vmatpush1.msra.mxu0 0.0
        %643 = vmatprep.subr.mxu0 0.0
        %644 = vmatpush1.msra.mxu0 0.0
        %645 = vmatprep.subr.mxu0 0.0
        %646 = vmatpush1.msra.mxu0 0.0
        %647 = vmatprep.subr.mxu0 0.0
        %648 = vmatpush1.msra.mxu0 0.0
        %649 = vmatprep.subr.mxu0 0.0
        %650 = vmatpush1.msra.mxu0 0.0
        %651 = vmatprep.subr.mxu0 0.0
        %652 = vmatpush1.msra.mxu0 0.0
        %653 = vmatprep.subr.mxu0 0.0
        %654 = vmatpush1.msra.mxu0 0.0
        %655 = vmatprep.subr.mxu0 0.0
        %656 = vmatpush1.msra.mxu0 0.0
        %657 = vmatprep.subr.mxu0 0.0
        %658 = vmatpush1.msra.mxu0 0.0
        %659 = vmatprep.subr.mxu0 0.0
        %660 = vmatpush1.msra.mxu0 0.0
        %661 = vmatprep.subr.mxu0 0.0
        %662 = vmatpush1.msra.mxu0 0.0
        %663 = vmatprep.subr.mxu0 0.0
        %664 = vmatpush1.msra.mxu0 0.0
        %665 = vmatprep.subr.mxu0 0.0
        %666 = vmatpush1.msra.mxu0 0.0
        %667 = vmatprep.subr.mxu0 0.0
        %668 = vmatpush1.msra.mxu0 0.0
        %669 = vmatprep.subr.mxu0 0.0
        %670 = vmatpush1.msra.mxu0 0.0
        %671 = vmatprep.mubr.f32.mxu0 0.0
        %672 = vmatmul.mubr.f32.gmra.mrb[0].mxu0 %v381
        %v673 = vpop.f32.mrb[0].mxu0
        %v674 = vadd.f32 0.0, %v673
        %v675 = vpop.f32.mrb[0].mxu0
        %676 = vmatprep.mubr.f32.mxu0 0.0
        %677 = vmatmul.mubr.f32.gmra.mrb[0].mxu0 %v384
        %v678 = vpop.f32.mrb[0].mxu0
        %v679 = vadd.f32 0.0, %v678
        %v680 = vpop.f32.mrb[0].mxu0
        %681 = vdwg.mxu0
        %682 = vmatprep.subr.mxu0 0.0
        %683 = vmatpush1.msra.mxu0 %v600
        %684 = vmatprep.subr.mxu0 0.0
        %685 = vmatpush1.msra.mxu0 %v601
        %686 = vmatprep.subr.mxu0 0.0
        %687 = vmatpush1.msra.mxu0 %v602
        %688 = vmatprep.subr.mxu0 0.0
        %689 = vmatpush1.msra.mxu0 %v603
        %690 = vmatprep.subr.mxu0 0.0
        %691 = vmatpush1.msra.mxu0 0.0
        %692 = vmatprep.subr.mxu0 0.0
        %693 = vmatpush1.msra.mxu0 0.0
        %694 = vmatprep.subr.mxu0 0.0
        %695 = vmatpush1.msra.mxu0 0.0
        %696 = vmatprep.subr.mxu0 0.0
        %697 = vmatpush1.msra.mxu0 0.0
        %698 = vmatprep.subr.mxu0 0.0
        %699 = vmatpush1.msra.mxu0 0.0
        %700 = vmatprep.subr.mxu0 0.0
        %701 = vmatpush1.msra.mxu0 0.0
        %702 = vmatprep.subr.mxu0 0.0
        %703 = vmatpush1.msra.mxu0 0.0
        %704 = vmatprep.subr.mxu0 0.0
        %705 = vmatpush1.msra.mxu0 0.0
        %706 = vmatprep.subr.mxu0 0.0
        %707 = vmatpush1.msra.mxu0 0.0
        %708 = vmatprep.subr.mxu0 0.0
        %709 = vmatpush1.msra.mxu0 0.0
        %710 = vmatprep.subr.mxu0 0.0
        %711 = vmatpush1.msra.mxu0 0.0
        %712 = vmatprep.subr.mxu0 0.0
        %713 = vmatpush1.msra.mxu0 0.0
        %714 = vmatprep.subr.mxu0 0.0
        %715 = vmatpush1.msra.mxu0 0.0
        %716 = vmatprep.subr.mxu0 0.0
        %717 = vmatpush1.msra.mxu0 0.0
        %718 = vmatprep.subr.mxu0 0.0
        %719 = vmatpush1.msra.mxu0 0.0
        %720 = vmatprep.subr.mxu0 0.0
        %721 = vmatpush1.msra.mxu0 0.0
        %722 = vmatprep.subr.mxu0 0.0
        %723 = vmatpush1.msra.mxu0 0.0
        %724 = vmatprep.subr.mxu0 0.0
        %725 = vmatpush1.msra.mxu0 0.0
        %726 = vmatprep.subr.mxu0 0.0
        %727 = vmatpush1.msra.mxu0 0.0
        %728 = vmatprep.subr.mxu0 0.0
        %729 = vmatpush1.msra.mxu0 0.0
        %730 = vmatprep.subr.mxu0 0.0
        %731 = vmatpush1.msra.mxu0 0.0
        %732 = vmatprep.subr.mxu0 0.0
        %733 = vmatpush1.msra.mxu0 0.0
        %734 = vmatprep.subr.mxu0 0.0
        %735 = vmatpush1.msra.mxu0 0.0
        %736 = vmatprep.subr.mxu0 0.0
        %737 = vmatpush1.msra.mxu0 0.0
        %738 = vmatprep.subr.mxu0 0.0
        %739 = vmatpush1.msra.mxu0 0.0
        %740 = vmatprep.subr.mxu0 0.0
        %741 = vmatpush1.msra.mxu0 0.0
        %742 = vmatprep.subr.mxu0 0.0
        %743 = vmatpush1.msra.mxu0 0.0
        %744 = vmatprep.subr.mxu0 0.0
        %745 = vmatpush1.msra.mxu0 0.0
        %746 = vmatprep.mubr.f32.mxu0 0.0
        %747 = vmatmul.mubr.f32.gmra.mrb[0].mxu0 %v463
        %v748 = vpop.f32.mrb[0].mxu0
        %v749 = vadd.f32 %v674, %v748
        %v750 = vpop.f32.mrb[0].mxu0
        %751 = vmatprep.mubr.f32.mxu0 0.0
        %752 = vmatmul.mubr.f32.gmra.mrb[0].mxu0 %v466
        %v753 = vpop.f32.mrb[0].mxu0
        %v754 = vadd.f32 %v679, %v753
        %v755 = vpop.f32.mrb[0].mxu0
        %756 = vdwg.mxu0
        %v757 = vadd.f32 %v749, %v546
        %v758 = vadd.f32 %v754, %v551
        %v759 = vmax.f32 %v757, 0.0
        %v760 = vmax.f32 %v758, 0.0
        %v761 = vmul.f32 %v759, %v560
        %v762 = vmul.f32 %v760, %v565
        %v763 = vsel %vm569, %v761, 0.0
        %v764 = vsel %vm569, %v762, 0.0
        %v765 = vadd.f32 %v763, %v764
        %v766 = vrot.slane %v765, 4
        %v767 = vadd.f32 %v765, %v766
        %v768 = vrot.slane %v767, 2
        %v769 = vadd.f32 %v767, %v768
        %v770 = vrot.slane %v769, 1
        %v771 = vadd.f32 %v769, %v770
        %v772 = vadd.f32 %v771, %v587
        %v773 = vxor.u32 %v772, 2147483648
        %v774 = vmul.f32 %v773, 1.442695
        %v775 = vpow.pop %v774
        %v776 = vadd.f32 %v775, 1.0
        %v777 = vrcp.pop %v776
        %v778 = vmul.f32 1.0, %v777
        %v779 = vmul.f32 %v605, %v778
        %v780 = vmul.f32 %v606, %v778
        %s781 = scalar_lea.vmem %s360, 16 [#allocation8]
        %782 = vst.msk [vmem:[%s781] sm:$0xff] %vm569, %v779
        %783 = vst.msk [vmem:[%s781 + $0x8] sm:$0xff] %vm569, %v780
        %s784 = sand.u32 %s212, 1
        %s785 = scalar_lea.sflag [#allocation5], %s784
        %s786 = sand.u32 %s212, 1
        %s787 = smul.addr %s786, 32
        %s788 = scalar_lea.vmem [#allocation8], %s787
        // Predicated region
        $region57: #{tpu_custom_call.1} parent=47 // pred_check
          %p789 = pneg %p222
        $region58: #{tpu_custom_call.1} parent=47 // pred_check_branch
          %791 = sbr.rel (%p789) target = $region60
        $region59: #{tpu_custom_call.1} parent=47 // pred_region
          %s792 = smul.u32 2, %s33
          %s794 = ssub.s32 512, 512
          %795 = vsyncadd %s785, %s794
          %s796 = smul.addr %s792, 2
          %s797 = sadd.s32 %s34, %s796
          %s798 = smul.addr %s797, 128
          %s799 = scalar_lea.hbm %s7, %s798
          %s800 = sshll.u32 %s788, 4
          %s801 = int_to_ptr.vmem [resolvable:$true] %s800
          %806 = dma.vmem_to_hbm [thread:$0]  %s801, 512, %s799, %s785, 128, 128, 8
        $region60: #{tpu_custom_call.1} parent=47 // pred_fallthru
          _
      $region48: #{tpu_custom_call.1} parent=5 // pred_fallthru
        _
      %p807 = scmp.le.s32.totalorder 2, %s24
      // Predicated region
      $region61: #{tpu_custom_call.1} parent=5 // pred_check
        %p808 = pneg %p807
      $region62: #{tpu_custom_call.1} parent=5 // pred_check_branch
        %810 = sbr.rel (%p808) target = $region64
      $region63: #{tpu_custom_call.1} parent=5 // pred_region
        %s811 = ssub.s32 %s24, 2
        // Predicated region
        $region65: #{tpu_custom_call.1} parent=63 // pred_check
          %p812 = pneg %p228
        $region66: #{tpu_custom_call.1} parent=63 // pred_check_branch
          %814 = sbr.rel (%p812) target = $region68
        $region67: #{tpu_custom_call.1} parent=63 // pred_region
          %s815 = sand.u32 %s213, 1
          %s816 = scalar_lea.sflag [#allocation5], %s815
          %s817 = sand.u32 %s213, 1
          %s818 = smul.addr %s817, 32
          %s819 = scalar_lea.vmem [#allocation8], %s818
          %820 = dma.done %s816, 512
        $region68: #{tpu_custom_call.1} parent=63 // pred_fallthru
          _
      $region64: #{tpu_custom_call.1} parent=5 // pred_fallthru
        _
    $region6: #{tpu_custom_call.1} parent=1 // loop_footer
      %s28 = sadd.s32 1, %s24
    $region7: #{tpu_custom_call.1} parent=1 // loop_footer_branch
      %23 = sbr.rel target = $region3
    $region8: #{tpu_custom_call.1} parent=1 // loop_exit
      _
    %821 = vsyncpa [#allocation4], 1
    %s822 = scalar_lea.sflag [#allocation4], 1
    %823 = vsyncpa %s822, 1
    %824 = vsyncpa [#allocation7], 1
    %s825 = scalar_lea.sflag [#allocation7], 1
    %826 = vsyncpa %s825, 1
    %827 = vsyncpa [#allocation5], 1
    %s828 = scalar_lea.sflag [#allocation5], 1
    %829 = vsyncpa %s828, 1

</llo_original>
